<compile_context>
chip_gen: v7x
topology: tpu7x:2x2x1
jax: 0.10.0
libtpu: 0.0.40
codegen_flags: <defaults>
</compile_context>

<pallas_src>
import functools

import jax
import jax.numpy as jnp
from jax.experimental import pallas as pl
from jax.experimental.pallas import tpu as pltpu


def vae_kernel(x_ref, eps_ref,
               w1_ref, b1_ref, w2_ref, b2_ref,
               wmv_ref, bmv_ref,
               wd1_ref, bd1_ref, wd2_ref, bd2_ref,
               wo_ref, bo_ref,
               recon_ref, mean_ref, logvar_ref, *, latent_dim):
    # Activations are (features, tb): batch on the lane axis, features on sublanes.
    x = x_ref[...].astype(jnp.bfloat16)                       # (input_dim, tb)

    # ---- encoder (bf16 matmuls, f32 accumulation) ----
    h1 = jnp.dot(w1_ref[...], x, preferred_element_type=jnp.float32) + b1_ref[...]
    h1 = jnp.maximum(h1, 0.0)                                  # (64, tb)
    h2 = jnp.dot(w2_ref[...], h1.astype(jnp.bfloat16),
                 preferred_element_type=jnp.float32) + b2_ref[...]
    h2 = jnp.maximum(h2, 0.0)                                  # (32, tb)

    # Fused mean/log_var head: one (2*latent, 32) @ (32, tb) matmul.
    mv = jnp.dot(wmv_ref[...], h2.astype(jnp.bfloat16),
                 preferred_element_type=jnp.float32) + bmv_ref[...]   # (2L, tb)
    z_mean = mv[:latent_dim, :]
    z_log_var = mv[latent_dim:, :]

    # ---- reparameterize: z = mean + eps * exp(0.5 * log_var)  (f32) ----
    std = jnp.exp(0.5 * z_log_var)
    z = z_mean + eps_ref[...] * std                            # (L, tb)

    # ---- decoder ----
    d1 = jnp.dot(wd1_ref[...], z.astype(jnp.bfloat16),
                 preferred_element_type=jnp.float32) + bd1_ref[...]
    d1 = jnp.maximum(d1, 0.0)                                  # (32, tb)
    d2 = jnp.dot(wd2_ref[...], d1.astype(jnp.bfloat16),
                 preferred_element_type=jnp.float32) + bd2_ref[...]
    d2 = jnp.maximum(d2, 0.0)                                  # (64, tb)
    logits = jnp.dot(wo_ref[...], d2.astype(jnp.bfloat16),
                     preferred_element_type=jnp.float32) + bo_ref[...]

    # Full, unmasked, lane-dense block stores (last dim = tb, a multiple of 128).
    recon_ref[...] = jax.nn.sigmoid(logits)                    # (input_dim, tb)
    mean_ref[...] = z_mean                                     # (latent, tb)
    logvar_ref[...] = z_log_var                                # (latent, tb)


def _round_up(a, b):
    return pl.cdiv(a, b) * b


def _choose_tiling(B, *, tb=None, max_tb=4096, min_steps=4):
    """Batch lives on the lane axis -> tiles are multiples of 128.

    Targets >= min_steps grid steps so the 'parallel' axis shards across v7x's two
    TensorCores and still leaves >= 2 steps per core for pipelining.
    """
    if tb is not None:
        assert tb % 128 == 0, "tb must be a multiple of 128 (lane tiling rule)"
        return _round_up(B, tb), tb
    Bp = _round_up(B, 128)
    steps = max(min_steps, pl.cdiv(Bp, max_tb))
    tb = min(Bp, max(128, _round_up(pl.cdiv(Bp, steps), 128)))
    Bp = _round_up(Bp, tb)
    return Bp, tb


def prepare_params(p):
    """One-time weight preprocessing (hoisted out of the per-call path):
    fuse mean/log_var heads, transpose weights to (out, in) bf16, biases to (out, 1) f32."""
    wmv = jnp.concatenate([p["wm"], p["wv"]], axis=1)   # (32, 2*latent) in (in, out) layout
    bmv = jnp.concatenate([p["bm"], p["bv"]], axis=1)

    def W(a):
        return jnp.asarray(a).T.astype(jnp.bfloat16)          # (out, in)

    def Bv(a):
        return jnp.asarray(a).reshape(1, -1).T.astype(jnp.float32)   # (out, 1)

    return (W(p["w1"]), Bv(p["b1"]), W(p["w2"]), Bv(p["b2"]),
            W(wmv), Bv(bmv),
            W(p["wd1"]), Bv(p["bd1"]), W(p["wd2"]), Bv(p["bd2"]),
            W(p["wo"]), Bv(p["bo"]))


def vae_forward(x, eps, prepared, *, tb=None, max_tb=4096, min_steps=4):
    """Fused VAE forward. Returns (reconstruction, z_mean, z_log_var) shaped (B, feat)."""
    B, input_dim = x.shape
    latent_dim = eps.shape[1]
    Bp, tb = _choose_tiling(B, tb=tb, max_tb=max_tb, min_steps=min_steps)

    # Layout plumbing: pad the batch and move it onto the lane axis.
    if Bp != B:
        x = jnp.pad(x, ((0, Bp - B), (0, 0)))
        eps = jnp.pad(eps, ((0, Bp - B), (0, 0)))
    x_t = x.T                      # (input_dim, Bp)
    eps_t = eps.T                  # (latent_dim, Bp)

    def lane_spec(rows):
        return pl.BlockSpec((rows, tb), lambda i: (0, i))

    def resident_spec(arr):
        # Constant index_map -> block stays resident in VMEM across grid steps.
        return pl.BlockSpec(arr.shape, lambda i: (0, 0))

    in_specs = ([lane_spec(input_dim), lane_spec(latent_dim)] +
                [resident_spec(w) for w in prepared])
    out_specs = [lane_spec(input_dim), lane_spec(latent_dim), lane_spec(latent_dim)]
    out_shape = (jax.ShapeDtypeStruct((input_dim, Bp), jnp.float32),
                 jax.ShapeDtypeStruct((latent_dim, Bp), jnp.float32),
                 jax.ShapeDtypeStruct((latent_dim, Bp), jnp.float32))

    # Advisory cost estimate (kept roughly honest: sigmoid ~ exp + reciprocal).
    flops = int(2 * Bp * (input_dim * 64 + 64 * 32 + 32 * (2 * latent_dim)
                          + latent_dim * 32 + 32 * 64 + 64 * input_dim))
    transcendentals = int(Bp * (latent_dim + 2 * input_dim))
    wbytes = int(sum(int(w.size) * w.dtype.itemsize for w in prepared))
    bytes_accessed = int(4 * Bp * (2 * input_dim + 3 * latent_dim) + wbytes)

    # VMEM working-set estimate: double-buffered I/O tiles + f32 intermediates + weights.
    tile_io = 2 * (2 * input_dim + 3 * latent_dim) * tb * 4
    interm = (64 + 32 + 4 * latent_dim + 32 + 64 + input_dim) * tb * 4
    vmem_est = tile_io + interm + wbytes
    cp = dict(dimension_semantics=("parallel",))
    if vmem_est > 12 * 1024 * 1024:
        # v5e's default scoped VMEM is only 16 MiB; raise the limit when big tiles need it.
        cp["vmem_limit_bytes"] = int(min(2 * vmem_est, 48 * 1024 * 1024))

    recon_t, mean_t, logvar_t = pl.pallas_call(
        functools.partial(vae_kernel, latent_dim=latent_dim),
        out_shape=out_shape,
        grid_spec=pltpu.PrefetchScalarGridSpec(
            num_scalar_prefetch=0,
            grid=(Bp // tb,),
            in_specs=in_specs,
            out_specs=out_specs,
        ),
        compiler_params=pltpu.CompilerParams(**cp),
        cost_estimate=pl.CostEstimate(flops=flops,
                                      transcendentals=transcendentals,
                                      bytes_accessed=bytes_accessed),
    )(x_t, eps_t, *prepared)

    # Layout plumbing back to the reference (B, features) interface.
    recon = recon_t[:, :B].T
    z_mean = mean_t[:, :B].T
    z_log_var = logvar_t[:, :B].T
    return recon, z_mean, z_log_var


def init_params(key, input_dim, latent_dim):
    """Deterministic init mirroring the nn.Linear shapes (weights stored (in, out))."""
    dims = [
        ("w1", "b1", input_dim, 64),
        ("w2", "b2", 64, 32),
        ("wm", "bm", 32, latent_dim),
        ("wv", "bv", 32, latent_dim),
        ("wd1", "bd1", latent_dim, 32),
        ("wd2", "bd2", 32, 64),
        ("wo", "bo", 64, input_dim),
    ]
    params = {}
    for (wname, bname, fan_in, fan_out) in dims:
        key, kw, kb = jax.random.split(key, 3)
        bound = 1.0 / (fan_in ** 0.5)
        params[wname] = jax.random.uniform(
            kw, (fan_in, fan_out), jnp.float32, minval=-bound, maxval=bound)
        params[bname] = jax.random.uniform(
            kb, (1, fan_out), jnp.float32, minval=-bound, maxval=bound)
    return params


def vae_reference(x, eps, p):
    """Plain-JAX reference (emulates the kernel's bf16-operand / f32-accumulate matmuls)."""
    def bdot(a, w):
        return jnp.dot(a.astype(jnp.bfloat16), w.astype(jnp.bfloat16),
                       preferred_element_type=jnp.float32)
    h1 = jax.nn.relu(bdot(x, p["w1"]) + p["b1"])
    h2 = jax.nn.relu(bdot(h1, p["w2"]) + p["b2"])
    z_mean = bdot(h2, p["wm"]) + p["bm"]
    z_log_var = bdot(h2, p["wv"]) + p["bv"]
    z = z_mean + eps * jnp.exp(0.5 * z_log_var)
    d1 = jax.nn.relu(bdot(z, p["wd1"]) + p["bd1"])
    d2 = jax.nn.relu(bdot(d1, p["wd2"]) + p["bd2"])
    recon = jax.nn.sigmoid(bdot(d2, p["wo"]) + p["bo"])
    return recon, z_mean, z_log_var


def _check(name, got, ref, atol=2e-3, rtol=2e-3):
    assert jnp.allclose(got, ref, atol=atol, rtol=rtol), f"{name} mismatch"


if __name__ == "__main__":
    input_dim = 16
    latent_dim = 8

    key = jax.random.PRNGKey(0)
    key, kp = jax.random.split(key)
    params = init_params(kp, input_dim, latent_dim)
    prepared = prepare_params(params)   # one-time weight preprocessing

    # Case 1: small batch (padded up to one 128-lane tile).
    key, kx, keps = jax.random.split(key, 3)
    x = jax.random.normal(kx, (64, input_dim), dtype=jnp.float32)
    eps = jax.random.normal(keps, (64, latent_dim), dtype=jnp.float32)
    r_ref, m_ref, v_ref = vae_reference(x, eps, params)
    recon, z_mean, z_log_var = vae_forward(x, eps, prepared)
    jax.block_until_ready((recon, z_mean, z_log_var))
    _check("reconstruction", recon, r_ref)
    _check("z_mean", z_mean, m_ref)
    _check("z_log_var", z_log_var, v_ref)

    # Case 2: batch not a multiple of 128 -> padding + multi-step grid (pipelining path).
    key, kx2, keps2 = jax.random.split(key, 3)
    x2 = jax.random.normal(kx2, (300, input_dim), dtype=jnp.float32)
    eps2 = jax.random.normal(keps2, (300, latent_dim), dtype=jnp.float32)
    r_ref2, m_ref2, v_ref2 = vae_reference(x2, eps2, params)
    recon2, z_mean2, z_log_var2 = vae_forward(x2, eps2, prepared, tb=128)
    jax.block_until_ready((recon2, z_mean2, z_log_var2))
    _check("reconstruction (padded)", recon2, r_ref2)
    _check("z_mean (padded)", z_mean2, m_ref2)
    _check("z_log_var (padded)", z_log_var2, v_ref2)

    print("KERNEL_OK")
</pallas_src>

<mosaic_0001>
module attributes {stable_mosaic.version = 11 : i64} {
  func.func @vae_kernel(%arg0: i32, %arg1: memref<16x128xf32, #tpu.memory_space<vmem>>, %arg2: memref<8x128xf32, #tpu.memory_space<vmem>>, %arg3: memref<64x16xbf16, #tpu.memory_space<vmem>>, %arg4: memref<64x1xf32, #tpu.memory_space<vmem>>, %arg5: memref<32x64xbf16, #tpu.memory_space<vmem>>, %arg6: memref<32x1xf32, #tpu.memory_space<vmem>>, %arg7: memref<16x32xbf16, #tpu.memory_space<vmem>>, %arg8: memref<16x1xf32, #tpu.memory_space<vmem>>, %arg9: memref<32x8xbf16, #tpu.memory_space<vmem>>, %arg10: memref<32x1xf32, #tpu.memory_space<vmem>>, %arg11: memref<64x32xbf16, #tpu.memory_space<vmem>>, %arg12: memref<64x1xf32, #tpu.memory_space<vmem>>, %arg13: memref<16x64xbf16, #tpu.memory_space<vmem>>, %arg14: memref<16x1xf32, #tpu.memory_space<vmem>>, %arg15: memref<16x128xf32, #tpu.memory_space<vmem>>, %arg16: memref<8x128xf32, #tpu.memory_space<vmem>>, %arg17: memref<8x128xf32, #tpu.memory_space<vmem>>) attributes {dimension_semantics = [#tpu.dimension_semantics<parallel>], iteration_bounds = array<i64: 1>, scalar_prefetch = 0 : i64, scratch_operands = 0 : i64, tpu.core_type = #tpu.core_type<tc>, window_params = [{transform_indices = @transform_0, window_bounds = array<i64: 16, 128>}, {transform_indices = @transform_1, window_bounds = array<i64: 8, 128>}, {pipeline_mode = #tpu.pipeline_mode<synchronous>, transform_indices = @transform_2, window_bounds = array<i64: 64, 16>}, {pipeline_mode = #tpu.pipeline_mode<synchronous>, transform_indices = @transform_3, window_bounds = array<i64: 64, 1>}, {pipeline_mode = #tpu.pipeline_mode<synchronous>, transform_indices = @transform_4, window_bounds = array<i64: 32, 64>}, {pipeline_mode = #tpu.pipeline_mode<synchronous>, transform_indices = @transform_5, window_bounds = array<i64: 32, 1>}, {pipeline_mode = #tpu.pipeline_mode<synchronous>, transform_indices = @transform_6, window_bounds = array<i64: 16, 32>}, {pipeline_mode = #tpu.pipeline_mode<synchronous>, transform_indices = @transform_7, window_bounds = array<i64: 16, 1>}, {pipeline_mode = #tpu.pipeline_mode<synchronous>, transform_indices = @transform_8, window_bounds = array<i64: 32, 8>}, {pipeline_mode = #tpu.pipeline_mode<synchronous>, transform_indices = @transform_9, window_bounds = array<i64: 32, 1>}, {pipeline_mode = #tpu.pipeline_mode<synchronous>, transform_indices = @transform_10, window_bounds = array<i64: 64, 32>}, {pipeline_mode = #tpu.pipeline_mode<synchronous>, transform_indices = @transform_11, window_bounds = array<i64: 64, 1>}, {pipeline_mode = #tpu.pipeline_mode<synchronous>, transform_indices = @transform_12, window_bounds = array<i64: 16, 64>}, {pipeline_mode = #tpu.pipeline_mode<synchronous>, transform_indices = @transform_13, window_bounds = array<i64: 16, 1>}, {transform_indices = @transform_14, window_bounds = array<i64: 16, 128>}, {transform_indices = @transform_15, window_bounds = array<i64: 8, 128>}, {transform_indices = @transform_16, window_bounds = array<i64: 8, 128>}]} {
    %c0 = arith.constant 0 : index
    %c0_0 = arith.constant 0 : index
    %0 = vector.load %arg1[%c0, %c0_0] : memref<16x128xf32, #tpu.memory_space<vmem>>, vector<16x128xf32>
    %1 = arith.truncf %0 : vector<16x128xf32> to vector<16x128xbf16>
    %c0_1 = arith.constant 0 : index
    %c0_2 = arith.constant 0 : index
    %2 = vector.load %arg3[%c0_1, %c0_2] : memref<64x16xbf16, #tpu.memory_space<vmem>>, vector<64x16xbf16>
    %cst = arith.constant dense<0.000000e+00> : vector<64x128xf32>
    %3 = tpu.matmul %2, %1, %cst {dimension_numbers = #tpu.dot_dimension_numbers<[1], [0], [0], [1], [0, 0, 1, 1], [], []>} : vector<64x16xbf16>, vector<16x128xbf16>, vector<64x128xf32> -> vector<64x128xf32>
    %c0_3 = arith.constant 0 : index
    %c0_4 = arith.constant 0 : index
    %4 = vector.load %arg4[%c0_3, %c0_4] : memref<64x1xf32, #tpu.memory_space<vmem>>, vector<64x1xf32>
    %5 = vector.broadcast %4 : vector<64x1xf32> to vector<64x128xf32>
    %6 = arith.addf %3, %5 : vector<64x128xf32>
    %cst_5 = arith.constant 0.000000e+00 : f32
    %7 = vector.broadcast %cst_5 : f32 to vector<64x128xf32>
    %8 = arith.maximumf %6, %7 : vector<64x128xf32>
    %c0_6 = arith.constant 0 : index
    %c0_7 = arith.constant 0 : index
    %9 = vector.load %arg5[%c0_6, %c0_7] : memref<32x64xbf16, #tpu.memory_space<vmem>>, vector<32x64xbf16>
    %10 = arith.truncf %8 : vector<64x128xf32> to vector<64x128xbf16>
    %cst_8 = arith.constant dense<0.000000e+00> : vector<32x128xf32>
    %11 = tpu.matmul %9, %10, %cst_8 {dimension_numbers = #tpu.dot_dimension_numbers<[1], [0], [0], [1], [0, 0, 1, 1], [], []>} : vector<32x64xbf16>, vector<64x128xbf16>, vector<32x128xf32> -> vector<32x128xf32>
    %c0_9 = arith.constant 0 : index
    %c0_10 = arith.constant 0 : index
    %12 = vector.load %arg6[%c0_9, %c0_10] : memref<32x1xf32, #tpu.memory_space<vmem>>, vector<32x1xf32>
    %13 = vector.broadcast %12 : vector<32x1xf32> to vector<32x128xf32>
    %14 = arith.addf %11, %13 : vector<32x128xf32>
    %cst_11 = arith.constant 0.000000e+00 : f32
    %15 = vector.broadcast %cst_11 : f32 to vector<32x128xf32>
    %16 = arith.maximumf %14, %15 : vector<32x128xf32>
    %c0_12 = arith.constant 0 : index
    %c0_13 = arith.constant 0 : index
    %17 = vector.load %arg7[%c0_12, %c0_13] : memref<16x32xbf16, #tpu.memory_space<vmem>>, vector<16x32xbf16>
    %18 = arith.truncf %16 : vector<32x128xf32> to vector<32x128xbf16>
    %cst_14 = arith.constant dense<0.000000e+00> : vector<16x128xf32>
    %19 = tpu.matmul %17, %18, %cst_14 {dimension_numbers = #tpu.dot_dimension_numbers<[1], [0], [0], [1], [0, 0, 1, 1], [], []>} : vector<16x32xbf16>, vector<32x128xbf16>, vector<16x128xf32> -> vector<16x128xf32>
    %c0_15 = arith.constant 0 : index
    %c0_16 = arith.constant 0 : index
    %20 = vector.load %arg8[%c0_15, %c0_16] : memref<16x1xf32, #tpu.memory_space<vmem>>, vector<16x1xf32>
    %21 = vector.broadcast %20 : vector<16x1xf32> to vector<16x128xf32>
    %22 = arith.addf %19, %21 : vector<16x128xf32>
    %23 = vector.extract_strided_slice %22 {offsets = [0, 0], sizes = [8, 128], strides = [1, 1]} : vector<16x128xf32> to vector<8x128xf32>
    %24 = vector.extract_strided_slice %22 {offsets = [8, 0], sizes = [8, 128], strides = [1, 1]} : vector<16x128xf32> to vector<8x128xf32>
    %cst_17 = arith.constant 5.000000e-01 : f32
    %25 = vector.broadcast %cst_17 : f32 to vector<8x128xf32>
    %26 = arith.mulf %25, %24 : vector<8x128xf32>
    %27 = math.exp %26 : vector<8x128xf32>
    %c0_18 = arith.constant 0 : index
    %c0_19 = arith.constant 0 : index
    %28 = vector.load %arg2[%c0_18, %c0_19] : memref<8x128xf32, #tpu.memory_space<vmem>>, vector<8x128xf32>
    %29 = arith.mulf %28, %27 : vector<8x128xf32>
    %30 = arith.addf %23, %29 : vector<8x128xf32>
    %c0_20 = arith.constant 0 : index
    %c0_21 = arith.constant 0 : index
    %31 = vector.load %arg9[%c0_20, %c0_21] : memref<32x8xbf16, #tpu.memory_space<vmem>>, vector<32x8xbf16>
    %32 = arith.truncf %30 : vector<8x128xf32> to vector<8x128xbf16>
    %cst_22 = arith.constant dense<0.000000e+00> : vector<32x128xf32>
    %33 = tpu.matmul %31, %32, %cst_22 {dimension_numbers = #tpu.dot_dimension_numbers<[1], [0], [0], [1], [0, 0, 1, 1], [], []>} : vector<32x8xbf16>, vector<8x128xbf16>, vector<32x128xf32> -> vector<32x128xf32>
    %c0_23 = arith.constant 0 : index
    %c0_24 = arith.constant 0 : index
    %34 = vector.load %arg10[%c0_23, %c0_24] : memref<32x1xf32, #tpu.memory_space<vmem>>, vector<32x1xf32>
    %35 = vector.broadcast %34 : vector<32x1xf32> to vector<32x128xf32>
    %36 = arith.addf %33, %35 : vector<32x128xf32>
    %cst_25 = arith.constant 0.000000e+00 : f32
    %37 = vector.broadcast %cst_25 : f32 to vector<32x128xf32>
    %38 = arith.maximumf %36, %37 : vector<32x128xf32>
    %c0_26 = arith.constant 0 : index
    %c0_27 = arith.constant 0 : index
    %39 = vector.load %arg11[%c0_26, %c0_27] : memref<64x32xbf16, #tpu.memory_space<vmem>>, vector<64x32xbf16>
    %40 = arith.truncf %38 : vector<32x128xf32> to vector<32x128xbf16>
    %cst_28 = arith.constant dense<0.000000e+00> : vector<64x128xf32>
    %41 = tpu.matmul %39, %40, %cst_28 {dimension_numbers = #tpu.dot_dimension_numbers<[1], [0], [0], [1], [0, 0, 1, 1], [], []>} : vector<64x32xbf16>, vector<32x128xbf16>, vector<64x128xf32> -> vector<64x128xf32>
    %c0_29 = arith.constant 0 : index
    %c0_30 = arith.constant 0 : index
    %42 = vector.load %arg12[%c0_29, %c0_30] : memref<64x1xf32, #tpu.memory_space<vmem>>, vector<64x1xf32>
    %43 = vector.broadcast %42 : vector<64x1xf32> to vector<64x128xf32>
    %44 = arith.addf %41, %43 : vector<64x128xf32>
    %cst_31 = arith.constant 0.000000e+00 : f32
    %45 = vector.broadcast %cst_31 : f32 to vector<64x128xf32>
    %46 = arith.maximumf %44, %45 : vector<64x128xf32>
    %c0_32 = arith.constant 0 : index
    %c0_33 = arith.constant 0 : index
    %47 = vector.load %arg13[%c0_32, %c0_33] : memref<16x64xbf16, #tpu.memory_space<vmem>>, vector<16x64xbf16>
    %48 = arith.truncf %46 : vector<64x128xf32> to vector<64x128xbf16>
    %cst_34 = arith.constant dense<0.000000e+00> : vector<16x128xf32>
    %49 = tpu.matmul %47, %48, %cst_34 {dimension_numbers = #tpu.dot_dimension_numbers<[1], [0], [0], [1], [0, 0, 1, 1], [], []>} : vector<16x64xbf16>, vector<64x128xbf16>, vector<16x128xf32> -> vector<16x128xf32>
    %c0_35 = arith.constant 0 : index
    %c0_36 = arith.constant 0 : index
    %50 = vector.load %arg14[%c0_35, %c0_36] : memref<16x1xf32, #tpu.memory_space<vmem>>, vector<16x1xf32>
    %51 = vector.broadcast %50 : vector<16x1xf32> to vector<16x128xf32>
    %52 = arith.addf %49, %51 : vector<16x128xf32>
    %53 = arith.negf %52 : vector<16x128xf32>
    %54 = math.exp %53 : vector<16x128xf32>
    %cst_37 = arith.constant 1.000000e+00 : f32
    %55 = vector.broadcast %cst_37 : f32 to vector<16x128xf32>
    %56 = arith.addf %55, %54 : vector<16x128xf32>
    %57 = arith.divf %55, %56 : vector<16x128xf32>
    %c0_38 = arith.constant 0 : index
    %c0_39 = arith.constant 0 : index
    %58 = vector.load %arg15[%c0_38, %c0_39] : memref<16x128xf32, #tpu.memory_space<vmem>>, vector<16x128xf32>
    tpu.vector_store %arg15[%c0_38, %c0_39], %57 {strides = array<i32>} : memref<16x128xf32, #tpu.memory_space<vmem>>, vector<16x128xf32>,
    %c0_40 = arith.constant 0 : index
    %c0_41 = arith.constant 0 : index
    %59 = vector.load %arg16[%c0_40, %c0_41] : memref<8x128xf32, #tpu.memory_space<vmem>>, vector<8x128xf32>
    tpu.vector_store %arg16[%c0_40, %c0_41], %23 {strides = array<i32>} : memref<8x128xf32, #tpu.memory_space<vmem>>, vector<8x128xf32>,
    %c0_42 = arith.constant 0 : index
    %c0_43 = arith.constant 0 : index
    %60 = vector.load %arg17[%c0_42, %c0_43] : memref<8x128xf32, #tpu.memory_space<vmem>>, vector<8x128xf32>
    tpu.vector_store %arg17[%c0_42, %c0_43], %24 {strides = array<i32>} : memref<8x128xf32, #tpu.memory_space<vmem>>, vector<8x128xf32>,
    return
  }
  func.func @transform_0(%arg0: i32) -> (i32, i32) {
    %c0_i32 = arith.constant 0 : i32
    %c0_i32_0 = arith.constant 0 : i32
    return %c0_i32, %arg0 : i32, i32
  }
  func.func @transform_1(%arg0: i32) -> (i32, i32) {
    %c0_i32 = arith.constant 0 : i32
    %c0_i32_0 = arith.constant 0 : i32
    return %c0_i32, %arg0 : i32, i32
  }
  func.func @transform_2(%arg0: i32) -> (i32, i32) {
    %c0_i32 = arith.constant 0 : i32
    %c0_i32_0 = arith.constant 0 : i32
    %c0_i32_1 = arith.constant 0 : i32
    return %c0_i32, %c0_i32_0 : i32, i32
  }
  func.func @transform_3(%arg0: i32) -> (i32, i32) {
    %c0_i32 = arith.constant 0 : i32
    %c0_i32_0 = arith.constant 0 : i32
    %c0_i32_1 = arith.constant 0 : i32
    return %c0_i32, %c0_i32_0 : i32, i32
  }
  func.func @transform_4(%arg0: i32) -> (i32, i32) {
    %c0_i32 = arith.constant 0 : i32
    %c0_i32_0 = arith.constant 0 : i32
    %c0_i32_1 = arith.constant 0 : i32
    return %c0_i32, %c0_i32_0 : i32, i32
  }
  func.func @transform_5(%arg0: i32) -> (i32, i32) {
    %c0_i32 = arith.constant 0 : i32
    %c0_i32_0 = arith.constant 0 : i32
    %c0_i32_1 = arith.constant 0 : i32
    return %c0_i32, %c0_i32_0 : i32, i32
  }
  func.func @transform_6(%arg0: i32) -> (i32, i32) {
    %c0_i32 = arith.constant 0 : i32
    %c0_i32_0 = arith.constant 0 : i32
    %c0_i32_1 = arith.constant 0 : i32
    return %c0_i32, %c0_i32_0 : i32, i32
  }
  func.func @transform_7(%arg0: i32) -> (i32, i32) {
    %c0_i32 = arith.constant 0 : i32
    %c0_i32_0 = arith.constant 0 : i32
    %c0_i32_1 = arith.constant 0 : i32
    return %c0_i32, %c0_i32_0 : i32, i32
  }
  func.func @transform_8(%arg0: i32) -> (i32, i32) {
    %c0_i32 = arith.constant 0 : i32
    %c0_i32_0 = arith.constant 0 : i32
    %c0_i32_1 = arith.constant 0 : i32
    return %c0_i32, %c0_i32_0 : i32, i32
  }
  func.func @transform_9(%arg0: i32) -> (i32, i32) {
    %c0_i32 = arith.constant 0 : i32
    %c0_i32_0 = arith.constant 0 : i32
    %c0_i32_1 = arith.constant 0 : i32
    return %c0_i32, %c0_i32_0 : i32, i32
  }
  func.func @transform_10(%arg0: i32) -> (i32, i32) {
    %c0_i32 = arith.constant 0 : i32
    %c0_i32_0 = arith.constant 0 : i32
    %c0_i32_1 = arith.constant 0 : i32
    return %c0_i32, %c0_i32_0 : i32, i32
  }
  func.func @transform_11(%arg0: i32) -> (i32, i32) {
    %c0_i32 = arith.constant 0 : i32
    %c0_i32_0 = arith.constant 0 : i32
    %c0_i32_1 = arith.constant 0 : i32
    return %c0_i32, %c0_i32_0 : i32, i32
  }
  func.func @transform_12(%arg0: i32) -> (i32, i32) {
    %c0_i32 = arith.constant 0 : i32
    %c0_i32_0 = arith.constant 0 : i32
    %c0_i32_1 = arith.constant 0 : i32
    return %c0_i32, %c0_i32_0 : i32, i32
  }
  func.func @transform_13(%arg0: i32) -> (i32, i32) {
    %c0_i32 = arith.constant 0 : i32
    %c0_i32_0 = arith.constant 0 : i32
    %c0_i32_1 = arith.constant 0 : i32
    return %c0_i32, %c0_i32_0 : i32, i32
  }
  func.func @transform_14(%arg0: i32) -> (i32, i32) {
    %c0_i32 = arith.constant 0 : i32
    %c0_i32_0 = arith.constant 0 : i32
    return %c0_i32, %arg0 : i32, i32
  }
  func.func @transform_15(%arg0: i32) -> (i32, i32) {
    %c0_i32 = arith.constant 0 : i32
    %c0_i32_0 = arith.constant 0 : i32
    return %c0_i32, %arg0 : i32, i32
  }
  func.func @transform_16(%arg0: i32) -> (i32, i32) {
    %c0_i32 = arith.constant 0 : i32
    %c0_i32_0 = arith.constant 0 : i32
    return %c0_i32, %arg0 : i32, i32
  }
}

</mosaic_0001>

<llo_original>
// kernel: tpu_custom_call.1
$region0: #{tpu_custom_call.1}
  #allocation0 [shape = 'u32[]', space=smem, size = 0x4, offset = 0x4, fixed_abs, tag = 'smem constant byte address 0x4 - core index']
  #allocation1 [shape = 'u32[144,128]{1,0:T(1,128)}', space=vmem, size = 0x12000, scoped, tag = 'internal scratch']
  %s0 = inlined_call_operand.vmem [shape: f32[16,128], index: 0, kind: input, shape index: {}]
  %s1 = inlined_call_operand.vmem [shape: f32[8,128], index: 1, kind: input, shape index: {}]
  %s2 = inlined_call_operand.vmem [shape: bf16[64,16], index: 2, kind: input, shape index: {}]
  %s3 = inlined_call_operand.vmem [shape: f32[64,1], index: 3, kind: input, shape index: {}]
  %s4 = inlined_call_operand.vmem [shape: bf16[32,64], index: 4, kind: input, shape index: {}]
  %s5 = inlined_call_operand.vmem [shape: f32[32,1], index: 5, kind: input, shape index: {}]
  %s6 = inlined_call_operand.vmem [shape: bf16[16,32], index: 6, kind: input, shape index: {}]
  %s7 = inlined_call_operand.vmem [shape: f32[16,1], index: 7, kind: input, shape index: {}]
  %s8 = inlined_call_operand.vmem [shape: bf16[32,8], index: 8, kind: input, shape index: {}]
  %s9 = inlined_call_operand.vmem [shape: f32[32,1], index: 9, kind: input, shape index: {}]
  %s10 = inlined_call_operand.vmem [shape: bf16[64,32], index: 10, kind: input, shape index: {}]
  %s11 = inlined_call_operand.vmem [shape: f32[64,1], index: 11, kind: input, shape index: {}]
  %s12 = inlined_call_operand.vmem [shape: bf16[16,64], index: 12, kind: input, shape index: {}]
  %s13 = inlined_call_operand.vmem [shape: f32[16,1], index: 13, kind: input, shape index: {}]
  %s14 = inlined_call_operand.hbm [shape: f32[16,128], index: 14, kind: output, shape index: {0}]
  %s15 = inlined_call_operand.hbm [shape: f32[8,128], index: 15, kind: output, shape index: {1}]
  %s16 = inlined_call_operand.hbm [shape: f32[8,128], index: 16, kind: output, shape index: {2}]
  %17 = xla_tuple %s14, %s15, %s16
  %s18 = sld [smem:[#allocation0]]
  $region82: #{tpu_custom_call.1} parent=0
    _
  %s20 = ssub.s32 1, %s18
  %s21 = scalar_select 0, %s20, %s18
  $region1: #{tpu_custom_call.1} parent=0
    #allocation2 [shape = 'u8[8192]{0}', space=vmem, size = 0x2000, scoped, tag = 'output window, operand 0, single buffered']
    #allocation3 [shape = 's32[1]{0}', space=sflag, size = 0x4, scoped, tag = 'scoped memory for tpu_custom_call.1']
    #allocation4 [shape = 'u8[4096]{0}', space=vmem, size = 0x1000, scoped, tag = 'output window, operand 1, single buffered']
    #allocation5 [shape = 's32[1]{0}', space=sflag, size = 0x4, scoped, tag = 'scoped memory for tpu_custom_call.1']
    #allocation6 [shape = 'u8[4096]{0}', space=vmem, size = 0x1000, scoped, tag = 'output window, operand 2, single buffered']
    %22 = vsyncpa [#allocation3], 0
    %23 = vsyncpa [#allocation5], 0
    // Predicated region
    $region2: #{tpu_custom_call.1} parent=1 // pred_check
      _
    $region3: #{tpu_custom_call.1} parent=1 // pred_check_branch
      %25 = sbr.rel (0) target = $region5
    $region4: #{tpu_custom_call.1} parent=1 // pred_region
      _
    $region5: #{tpu_custom_call.1} parent=1 // pred_fallthru
      _
    // Predicated region
    $region6: #{tpu_custom_call.1} parent=1 // pred_check
      _
    $region7: #{tpu_custom_call.1} parent=1 // pred_check_branch
      %27 = sbr.rel (0) target = $region9
    $region8: #{tpu_custom_call.1} parent=1 // pred_region
      _
    $region9: #{tpu_custom_call.1} parent=1 // pred_fallthru
      _
    // Predicated region
    $region10: #{tpu_custom_call.1} parent=1 // pred_check
      _
    $region11: #{tpu_custom_call.1} parent=1 // pred_check_branch
      %29 = sbr.rel (0) target = $region13
    $region12: #{tpu_custom_call.1} parent=1 // pred_region
      _
    $region13: #{tpu_custom_call.1} parent=1 // pred_fallthru
      _
    // Predicated region
    $region14: #{tpu_custom_call.1} parent=1 // pred_check
      _
    $region15: #{tpu_custom_call.1} parent=1 // pred_check_branch
      %31 = sbr.rel (0) target = $region17
    $region16: #{tpu_custom_call.1} parent=1 // pred_region
      _
    $region17: #{tpu_custom_call.1} parent=1 // pred_fallthru
      _
    // Predicated region
    $region18: #{tpu_custom_call.1} parent=1 // pred_check
      _
    $region19: #{tpu_custom_call.1} parent=1 // pred_check_branch
      %33 = sbr.rel (0) target = $region21
    $region20: #{tpu_custom_call.1} parent=1 // pred_region
      _
    $region21: #{tpu_custom_call.1} parent=1 // pred_fallthru
      _
    // Predicated region
    $region22: #{tpu_custom_call.1} parent=1 // pred_check
      _
    $region23: #{tpu_custom_call.1} parent=1 // pred_check_branch
      %35 = sbr.rel (0) target = $region25
    $region24: #{tpu_custom_call.1} parent=1 // pred_region
      _
    $region25: #{tpu_custom_call.1} parent=1 // pred_fallthru
      _
    // Predicated region
    $region26: #{tpu_custom_call.1} parent=1 // pred_check
      _
    $region27: #{tpu_custom_call.1} parent=1 // pred_check_branch
      %37 = sbr.rel (0) target = $region29
    $region28: #{tpu_custom_call.1} parent=1 // pred_region
      _
    $region29: #{tpu_custom_call.1} parent=1 // pred_fallthru
      _
    // Predicated region
    $region30: #{tpu_custom_call.1} parent=1 // pred_check
      _
    $region31: #{tpu_custom_call.1} parent=1 // pred_check_branch
      %39 = sbr.rel (0) target = $region33
    $region32: #{tpu_custom_call.1} parent=1 // pred_region
      _
    $region33: #{tpu_custom_call.1} parent=1 // pred_fallthru
      _
    // Predicated region
    $region34: #{tpu_custom_call.1} parent=1 // pred_check
      _
    $region35: #{tpu_custom_call.1} parent=1 // pred_check_branch
      %41 = sbr.rel (0) target = $region37
    $region36: #{tpu_custom_call.1} parent=1 // pred_region
      _
    $region37: #{tpu_custom_call.1} parent=1 // pred_fallthru
      _
    // Predicated region
    $region38: #{tpu_custom_call.1} parent=1 // pred_check
      _
    $region39: #{tpu_custom_call.1} parent=1 // pred_check_branch
      %43 = sbr.rel (0) target = $region41
    $region40: #{tpu_custom_call.1} parent=1 // pred_region
      _
    $region41: #{tpu_custom_call.1} parent=1 // pred_fallthru
      _
    // Predicated region
    $region42: #{tpu_custom_call.1} parent=1 // pred_check
      _
    $region43: #{tpu_custom_call.1} parent=1 // pred_check_branch
      %45 = sbr.rel (0) target = $region45
    $region44: #{tpu_custom_call.1} parent=1 // pred_region
      _
    $region45: #{tpu_custom_call.1} parent=1 // pred_fallthru
      _
    // Predicated region
    $region46: #{tpu_custom_call.1} parent=1 // pred_check
      _
    $region47: #{tpu_custom_call.1} parent=1 // pred_check_branch
      %47 = sbr.rel (0) target = $region49
    $region48: #{tpu_custom_call.1} parent=1 // pred_region
      _
    $region49: #{tpu_custom_call.1} parent=1 // pred_fallthru
      _
    // Predicated region
    $region50: #{tpu_custom_call.1} parent=1 // pred_check
      _
    $region51: #{tpu_custom_call.1} parent=1 // pred_check_branch
      %49 = sbr.rel (0) target = $region53
    $region52: #{tpu_custom_call.1} parent=1 // pred_region
      _
    $region53: #{tpu_custom_call.1} parent=1 // pred_fallthru
      _
    // Predicated region
    $region54: #{tpu_custom_call.1} parent=1 // pred_check
      _
    $region55: #{tpu_custom_call.1} parent=1 // pred_check_branch
      %51 = sbr.rel (0) target = $region57
    $region56: #{tpu_custom_call.1} parent=1 // pred_region
      _
    $region57: #{tpu_custom_call.1} parent=1 // pred_fallthru
      _
    %v53 = vld [vmem:[%s0] sm:$0xff]
    %v54 = vld [vmem:[%s0 + $0x8] sm:$0xff]
    %v55 = vpack.c.bf16 %v54, %v53
    %v56 = vld [vmem:[%s2] sm:$0xf]
    %v57 = vld [vmem:[%s2 + $0x4] sm:$0xf]
    %v58 = vld [vmem:[%s2 + $0x8] sm:$0xf]
    %v59 = vld [vmem:[%s2 + $0xc] sm:$0xf]
    %v60 = vld [vmem:[%s2 + $0x10] sm:$0xf]
    %v61 = vld [vmem:[%s2 + $0x14] sm:$0xf]
    %v62 = vld [vmem:[%s2 + $0x18] sm:$0xf]
    %v63 = vld [vmem:[%s2 + $0x1c] sm:$0xf]
    %v64 = vld [vmem:[%s3] sm:$0xff]
    %v65 = vld [vmem:[%s3 + $0x8] sm:$0xff]
    %v66 = vld [vmem:[%s3 + $0x10] sm:$0xff]
    %v67 = vld [vmem:[%s3 + $0x18] sm:$0xff]
    %v68 = vld [vmem:[%s3 + $0x20] sm:$0xff]
    %v69 = vld [vmem:[%s3 + $0x28] sm:$0xff]
    %v70 = vld [vmem:[%s3 + $0x30] sm:$0xff]
    %v71 = vld [vmem:[%s3 + $0x38] sm:$0xff]
    %73 = vset.pattern.permute.xlu0 0
    %74 = vperm.xlu0 %73, %v64
    %v75 = vpop.permute.xlu0 %74
    %78 = vset.pattern.permute.xlu0 0
    %79 = vperm.xlu0 %78, %v65
    %v80 = vpop.permute.xlu0 %79
    %83 = vset.pattern.permute.xlu0 0
    %84 = vperm.xlu0 %83, %v66
    %v85 = vpop.permute.xlu0 %84
    %88 = vset.pattern.permute.xlu0 0
    %89 = vperm.xlu0 %88, %v67
    %v90 = vpop.permute.xlu0 %89
    %93 = vset.pattern.permute.xlu0 0
    %94 = vperm.xlu0 %93, %v68
    %v95 = vpop.permute.xlu0 %94
    %98 = vset.pattern.permute.xlu0 0
    %99 = vperm.xlu0 %98, %v69
    %v100 = vpop.permute.xlu0 %99
    %103 = vset.pattern.permute.xlu0 0
    %104 = vperm.xlu0 %103, %v70
    %v105 = vpop.permute.xlu0 %104
    %108 = vset.pattern.permute.xlu0 0
    %109 = vperm.xlu0 %108, %v71
    %v110 = vpop.permute.xlu0 %109
    %v120 = vunpack.c.l.b16 %v56
    %v121 = vunpack.c.l.b16 %v57
    %v122 = vunpack.c.l.b16 %v58
    %v123 = vunpack.c.l.b16 %v59
    %v124 = vunpack.c.l.b16 %v60
    %v125 = vunpack.c.l.b16 %v61
    %v126 = vunpack.c.l.b16 %v62
    %v127 = vunpack.c.l.b16 %v63
    %v128 = vpack.c.b16 %v121, %v120
    %v129 = vpack.c.b16 %v123, %v122
    %v130 = vpack.c.b16 %v125, %v124
    %v131 = vpack.c.b16 %v127, %v126
    %vm132 = vcmask 130048
    %v134 = vsel %vm132, %v128, 0
    %v137 = vsel %vm132, %v129, 0
    %v140 = vsel %vm132, %v130, 0
    %v143 = vsel %vm132, %v131, 0
    %145 = vmatprep.subr.bf16.mxu0 0
    %146 = vmatpush1.bf16.msra.mxu0 %v55
    %147 = vmatprep.subr.bf16.mxu0 0
    %148 = vmatpush1.bf16.msra.mxu0 0
    %149 = vmatprep.subr.bf16.mxu0 0
    %150 = vmatpush1.bf16.msra.mxu0 0
    %151 = vmatprep.subr.bf16.mxu0 0
    %152 = vmatpush1.bf16.msra.mxu0 0
    %153 = vmatprep.subr.bf16.mxu0 0
    %154 = vmatpush1.bf16.msra.mxu0 0
    %155 = vmatprep.subr.bf16.mxu0 0
    %156 = vmatpush1.bf16.msra.mxu0 0
    %157 = vmatprep.subr.bf16.mxu0 0
    %158 = vmatpush1.bf16.msra.mxu0 0
    %159 = vmatprep.subr.bf16.mxu0 0
    %160 = vmatpush1.bf16.msra.mxu0 0
    %161 = vmatprep.subr.bf16.mxu0 0
    %162 = vmatpush1.bf16.msra.mxu0 0
    %163 = vmatprep.subr.bf16.mxu0 0
    %164 = vmatpush1.bf16.msra.mxu0 0
    %165 = vmatprep.subr.bf16.mxu0 0
    %166 = vmatpush1.bf16.msra.mxu0 0
    %167 = vmatprep.subr.bf16.mxu0 0
    %168 = vmatpush1.bf16.msra.mxu0 0
    %169 = vmatprep.subr.bf16.mxu0 0
    %170 = vmatpush1.bf16.msra.mxu0 0
    %171 = vmatprep.subr.bf16.mxu0 0
    %172 = vmatpush1.bf16.msra.mxu0 0
    %173 = vmatprep.subr.bf16.mxu0 0
    %174 = vmatpush1.bf16.msra.mxu0 0
    %175 = vmatprep.subr.bf16.mxu0 0
    %176 = vmatpush1.bf16.msra.mxu0 0
    %177 = vmatprep.mubr.bf16.mxu0 0
    %178 = vmatmul.mubr.bf16.gmra.mrb[0].mxu0 %v134
    %v179 = vpop.f32.mrb[0].mxu0
    %v180 = vadd.f32 %v75, %v179
    %v181 = vpop.f32.mrb[0].mxu0
    %v182 = vpop.f32.mrb[0].mxu0
    %v183 = vadd.f32 %v80, %v182
    %v184 = vpop.f32.mrb[0].mxu0
    %185 = vmatprep.mubr.bf16.mxu0 0
    %186 = vmatmul.mubr.bf16.gmra.mrb[0].mxu0 %v137
    %v187 = vpop.f32.mrb[0].mxu0
    %v188 = vadd.f32 %v85, %v187
    %v189 = vpop.f32.mrb[0].mxu0
    %v190 = vpop.f32.mrb[0].mxu0
    %v191 = vadd.f32 %v90, %v190
    %v192 = vpop.f32.mrb[0].mxu0
    %193 = vmatprep.mubr.bf16.mxu0 0
    %194 = vmatmul.mubr.bf16.gmra.mrb[0].mxu0 %v140
    %v195 = vpop.f32.mrb[0].mxu0
    %v196 = vadd.f32 %v95, %v195
    %v197 = vpop.f32.mrb[0].mxu0
    %v198 = vpop.f32.mrb[0].mxu0
    %v199 = vadd.f32 %v100, %v198
    %v200 = vpop.f32.mrb[0].mxu0
    %201 = vmatprep.mubr.bf16.mxu0 0
    %202 = vmatmul.mubr.bf16.gmra.mrb[0].mxu0 %v143
    %v203 = vpop.f32.mrb[0].mxu0
    %v204 = vadd.f32 %v105, %v203
    %v205 = vpop.f32.mrb[0].mxu0
    %v206 = vpop.f32.mrb[0].mxu0
    %v207 = vadd.f32 %v110, %v206
    %v208 = vpop.f32.mrb[0].mxu0
    %209 = vdwg.mxu0
    %v210 = vmax.f32 %v180, 0.0
    %v211 = vmax.f32 %v183, 0.0
    %v212 = vmax.f32 %v188, 0.0
    %v213 = vmax.f32 %v191, 0.0
    %v214 = vmax.f32 %v196, 0.0
    %v215 = vmax.f32 %v199, 0.0
    %v216 = vmax.f32 %v204, 0.0
    %v217 = vmax.f32 %v207, 0.0
    %v218 = vld [vmem:[%s4] sm:$0xf]
    %v219 = vld [vmem:[%s4 + $0x4] sm:$0xf]
    %v220 = vld [vmem:[%s4 + $0x8] sm:$0xf]
    %v221 = vld [vmem:[%s4 + $0xc] sm:$0xf]
    %v222 = vpack.c.bf16 %v211, %v210
    %v223 = vpack.c.bf16 %v213, %v212
    %v224 = vpack.c.bf16 %v215, %v214
    %v225 = vpack.c.bf16 %v217, %v216
    %v226 = vld [vmem:[%s5] sm:$0xff]
    %v227 = vld [vmem:[%s5 + $0x8] sm:$0xff]
    %v228 = vld [vmem:[%s5 + $0x10] sm:$0xff]
    %v229 = vld [vmem:[%s5 + $0x18] sm:$0xff]
    %231 = vset.pattern.permute.xlu0 0
    %232 = vperm.xlu0 %231, %v226
    %v233 = vpop.permute.xlu0 %232
    %236 = vset.pattern.permute.xlu0 0
    %237 = vperm.xlu0 %236, %v227
    %v238 = vpop.permute.xlu0 %237
    %241 = vset.pattern.permute.xlu0 0
    %242 = vperm.xlu0 %241, %v228
    %v243 = vpop.permute.xlu0 %242
    %246 = vset.pattern.permute.xlu0 0
    %247 = vperm.xlu0 %246, %v229
    %v248 = vpop.permute.xlu0 %247
    %v254 = vunpack.c.l.b16 %v218
    %v255 = vunpack.c.l.b16 %v219
    %v256 = vunpack.c.l.b16 %v220
    %v257 = vunpack.c.l.b16 %v221
    %v258 = vpack.c.b16 %v255, %v254
    %v259 = vpack.c.b16 %v257, %v256
    %vm260 = vcmask 523264
    %v262 = vsel %vm260, %v258, 0
    %v265 = vsel %vm260, %v259, 0
    %267 = vmatprep.subr.bf16.mxu0 0
    %268 = vmatpush1.bf16.msra.mxu0 %v222
    %269 = vmatprep.subr.bf16.mxu0 0
    %270 = vmatpush1.bf16.msra.mxu0 %v223
    %271 = vmatprep.subr.bf16.mxu0 0
    %272 = vmatpush1.bf16.msra.mxu0 %v224
    %273 = vmatprep.subr.bf16.mxu0 0
    %274 = vmatpush1.bf16.msra.mxu0 %v225
    %275 = vmatprep.subr.bf16.mxu0 0
    %276 = vmatpush1.bf16.msra.mxu0 0
    %277 = vmatprep.subr.bf16.mxu0 0
    %278 = vmatpush1.bf16.msra.mxu0 0
    %279 = vmatprep.subr.bf16.mxu0 0
    %280 = vmatpush1.bf16.msra.mxu0 0
    %281 = vmatprep.subr.bf16.mxu0 0
    %282 = vmatpush1.bf16.msra.mxu0 0
    %283 = vmatprep.subr.bf16.mxu0 0
    %284 = vmatpush1.bf16.msra.mxu0 0
    %285 = vmatprep.subr.bf16.mxu0 0
    %286 = vmatpush1.bf16.msra.mxu0 0
    %287 = vmatprep.subr.bf16.mxu0 0
    %288 = vmatpush1.bf16.msra.mxu0 0
    %289 = vmatprep.subr.bf16.mxu0 0
    %290 = vmatpush1.bf16.msra.mxu0 0
    %291 = vmatprep.subr.bf16.mxu0 0
    %292 = vmatpush1.bf16.msra.mxu0 0
    %293 = vmatprep.subr.bf16.mxu0 0
    %294 = vmatpush1.bf16.msra.mxu0 0
    %295 = vmatprep.subr.bf16.mxu0 0
    %296 = vmatpush1.bf16.msra.mxu0 0
    %297 = vmatprep.subr.bf16.mxu0 0
    %298 = vmatpush1.bf16.msra.mxu0 0
    %299 = vmatprep.mubr.bf16.mxu0 0
    %300 = vmatmul.mubr.bf16.gmra.mrb[0].mxu0 %v262
    %v301 = vpop.f32.mrb[0].mxu0
    %v302 = vadd.f32 %v233, %v301
    %v303 = vpop.f32.mrb[0].mxu0
    %v304 = vpop.f32.mrb[0].mxu0
    %v305 = vadd.f32 %v238, %v304
    %v306 = vpop.f32.mrb[0].mxu0
    %307 = vmatprep.mubr.bf16.mxu0 0
    %308 = vmatmul.mubr.bf16.gmra.mrb[0].mxu0 %v265
    %v309 = vpop.f32.mrb[0].mxu0
    %v310 = vadd.f32 %v243, %v309
    %v311 = vpop.f32.mrb[0].mxu0
    %v312 = vpop.f32.mrb[0].mxu0
    %v313 = vadd.f32 %v248, %v312
    %v314 = vpop.f32.mrb[0].mxu0
    %315 = vdwg.mxu0
    %v316 = vmax.f32 %v302, 0.0
    %v317 = vmax.f32 %v305, 0.0
    %v318 = vmax.f32 %v310, 0.0
    %v319 = vmax.f32 %v313, 0.0
    %v320 = vld [vmem:[%s6] sm:$0xf]
    %v321 = vld [vmem:[%s6 + $0x4] sm:$0xf]
    %v322 = vpack.c.bf16 %v317, %v316
    %v323 = vpack.c.bf16 %v319, %v318
    %v324 = vld [vmem:[%s7] sm:$0xff]
    %v325 = vld [vmem:[%s7 + $0x8] sm:$0xff]
    %327 = vset.pattern.permute.xlu0 0
    %328 = vperm.xlu0 %327, %v324
    %v329 = vpop.permute.xlu0 %328
    %332 = vset.pattern.permute.xlu0 0
    %333 = vperm.xlu0 %332, %v325
    %v334 = vpop.permute.xlu0 %333
    %v338 = vunpack.c.l.b16 %v320
    %v339 = vunpack.c.l.b16 %v321
    %v340 = vpack.c.b16 %v339, %v338
    %vm341 = vcmask 261120
    %v343 = vsel %vm341, %v340, 0
    %345 = vmatprep.subr.bf16.mxu0 0
    %346 = vmatpush1.bf16.msra.mxu0 %v322
    %347 = vmatprep.subr.bf16.mxu0 0
    %348 = vmatpush1.bf16.msra.mxu0 %v323
    %349 = vmatprep.subr.bf16.mxu0 0
    %350 = vmatpush1.bf16.msra.mxu0 0
    %351 = vmatprep.subr.bf16.mxu0 0
    %352 = vmatpush1.bf16.msra.mxu0 0
    %353 = vmatprep.subr.bf16.mxu0 0
    %354 = vmatpush1.bf16.msra.mxu0 0
    %355 = vmatprep.subr.bf16.mxu0 0
    %356 = vmatpush1.bf16.msra.mxu0 0
    %357 = vmatprep.subr.bf16.mxu0 0
    %358 = vmatpush1.bf16.msra.mxu0 0
    %359 = vmatprep.subr.bf16.mxu0 0
    %360 = vmatpush1.bf16.msra.mxu0 0
    %361 = vmatprep.subr.bf16.mxu0 0
    %362 = vmatpush1.bf16.msra.mxu0 0
    %363 = vmatprep.subr.bf16.mxu0 0
    %364 = vmatpush1.bf16.msra.mxu0 0
    %365 = vmatprep.subr.bf16.mxu0 0
    %366 = vmatpush1.bf16.msra.mxu0 0
    %367 = vmatprep.subr.bf16.mxu0 0
    %368 = vmatpush1.bf16.msra.mxu0 0
    %369 = vmatprep.subr.bf16.mxu0 0
    %370 = vmatpush1.bf16.msra.mxu0 0
    %371 = vmatprep.subr.bf16.mxu0 0
    %372 = vmatpush1.bf16.msra.mxu0 0
    %373 = vmatprep.subr.bf16.mxu0 0
    %374 = vmatpush1.bf16.msra.mxu0 0
    %375 = vmatprep.subr.bf16.mxu0 0
    %376 = vmatpush1.bf16.msra.mxu0 0
    %377 = vmatprep.mubr.bf16.mxu0 0
    %378 = vmatmul.mubr.bf16.gmra.mrb[0].mxu0 %v343
    %v379 = vpop.f32.mrb[0].mxu0
    %v380 = vadd.f32 %v329, %v379
    %v381 = vpop.f32.mrb[0].mxu0
    %v382 = vpop.f32.mrb[0].mxu0
    %v383 = vadd.f32 %v334, %v382
    %v384 = vpop.f32.mrb[0].mxu0
    %385 = vdwg.mxu0
    %v386 = vmul.f32 %v383, 0.5
    %v387 = vmul.f32 %v386, 1.442695
    %v388 = vpow.pop %v387
    %v389 = vld [vmem:[%s1] sm:$0xff]
    %v390 = vmul.f32 %v389, %v388
    %v391 = vadd.f32 %v380, %v390
    %v392 = vld [vmem:[%s8] sm:$0xf]
    %v393 = vld [vmem:[%s8 + $0x4] sm:$0xf]
    %v394 = vld [vmem:[%s8 + $0x8] sm:$0xf]
    %v395 = vld [vmem:[%s8 + $0xc] sm:$0xf]
    %v396 = vpack.c.bf16 %v391, %v391
    %v397 = vld [vmem:[%s9] sm:$0xff]
    %v398 = vld [vmem:[%s9 + $0x8] sm:$0xff]
    %v399 = vld [vmem:[%s9 + $0x10] sm:$0xff]
    %v400 = vld [vmem:[%s9 + $0x18] sm:$0xff]
    %402 = vset.pattern.permute.xlu0 0
    %403 = vperm.xlu0 %402, %v397
    %v404 = vpop.permute.xlu0 %403
    %407 = vset.pattern.permute.xlu0 0
    %408 = vperm.xlu0 %407, %v398
    %v409 = vpop.permute.xlu0 %408
    %412 = vset.pattern.permute.xlu0 0
    %413 = vperm.xlu0 %412, %v399
    %v414 = vpop.permute.xlu0 %413
    %417 = vset.pattern.permute.xlu0 0
    %418 = vperm.xlu0 %417, %v400
    %v419 = vpop.permute.xlu0 %418
    %v425 = vunpack.c.l.b16 %v392
    %v426 = vunpack.c.l.b16 %v393
    %v427 = vunpack.c.l.b16 %v394
    %v428 = vunpack.c.l.b16 %v395
    %v429 = vpack.c.b16 %v426, %v425
    %v430 = vpack.c.b16 %v428, %v427
    %vm431 = vcmask 64512
    %v433 = vsel %vm431, %v429, 0
    %v436 = vsel %vm431, %v430, 0
    %vm438 = vcmask 1043456
    %v440 = vsel %vm438, %v396, 0
    %442 = vmatprep.subr.bf16.mxu0 0
    %443 = vmatpush1.bf16.msra.mxu0 %v440
    %444 = vmatprep.subr.bf16.mxu0 0
    %445 = vmatpush1.bf16.msra.mxu0 0
    %446 = vmatprep.subr.bf16.mxu0 0
    %447 = vmatpush1.bf16.msra.mxu0 0
    %448 = vmatprep.subr.bf16.mxu0 0
    %449 = vmatpush1.bf16.msra.mxu0 0
    %450 = vmatprep.subr.bf16.mxu0 0
    %451 = vmatpush1.bf16.msra.mxu0 0
    %452 = vmatprep.subr.bf16.mxu0 0
    %453 = vmatpush1.bf16.msra.mxu0 0
    %454 = vmatprep.subr.bf16.mxu0 0
    %455 = vmatpush1.bf16.msra.mxu0 0
    %456 = vmatprep.subr.bf16.mxu0 0
    %457 = vmatpush1.bf16.msra.mxu0 0
    %458 = vmatprep.subr.bf16.mxu0 0
    %459 = vmatpush1.bf16.msra.mxu0 0
    %460 = vmatprep.subr.bf16.mxu0 0
    %461 = vmatpush1.bf16.msra.mxu0 0
    %462 = vmatprep.subr.bf16.mxu0 0
    %463 = vmatpush1.bf16.msra.mxu0 0
    %464 = vmatprep.subr.bf16.mxu0 0
    %465 = vmatpush1.bf16.msra.mxu0 0
    %466 = vmatprep.subr.bf16.mxu0 0
    %467 = vmatpush1.bf16.msra.mxu0 0
    %468 = vmatprep.subr.bf16.mxu0 0
    %469 = vmatpush1.bf16.msra.mxu0 0
    %470 = vmatprep.subr.bf16.mxu0 0
    %471 = vmatpush1.bf16.msra.mxu0 0
    %472 = vmatprep.subr.bf16.mxu0 0
    %473 = vmatpush1.bf16.msra.mxu0 0
    %474 = vmatprep.mubr.bf16.mxu0 0
    %475 = vmatmul.mubr.bf16.gmra.mrb[0].mxu0 %v433
    %v476 = vpop.f32.mrb[0].mxu0
    %v477 = vadd.f32 %v404, %v476
    %v478 = vpop.f32.mrb[0].mxu0
    %v479 = vpop.f32.mrb[0].mxu0
    %v480 = vadd.f32 %v409, %v479
    %v481 = vpop.f32.mrb[0].mxu0
    %482 = vmatprep.mubr.bf16.mxu0 0
    %483 = vmatmul.mubr.bf16.gmra.mrb[0].mxu0 %v436
    %v484 = vpop.f32.mrb[0].mxu0
    %v485 = vadd.f32 %v414, %v484
    %v486 = vpop.f32.mrb[0].mxu0
    %v487 = vpop.f32.mrb[0].mxu0
    %v488 = vadd.f32 %v419, %v487
    %v489 = vpop.f32.mrb[0].mxu0
    %490 = vdwg.mxu0
    %v491 = vmax.f32 %v477, 0.0
    %v492 = vmax.f32 %v480, 0.0
    %v493 = vmax.f32 %v485, 0.0
    %v494 = vmax.f32 %v488, 0.0
    %v495 = vld [vmem:[%s10] sm:$0xf]
    %v496 = vld [vmem:[%s10 + $0x4] sm:$0xf]
    %v497 = vld [vmem:[%s10 + $0x8] sm:$0xf]
    %v498 = vld [vmem:[%s10 + $0xc] sm:$0xf]
    %v499 = vld [vmem:[%s10 + $0x10] sm:$0xf]
    %v500 = vld [vmem:[%s10 + $0x14] sm:$0xf]
    %v501 = vld [vmem:[%s10 + $0x18] sm:$0xf]
    %v502 = vld [vmem:[%s10 + $0x1c] sm:$0xf]
    %v503 = vpack.c.bf16 %v492, %v491
    %v504 = vpack.c.bf16 %v494, %v493
    %v505 = vld [vmem:[%s11] sm:$0xff]
    %v506 = vld [vmem:[%s11 + $0x8] sm:$0xff]
    %v507 = vld [vmem:[%s11 + $0x10] sm:$0xff]
    %v508 = vld [vmem:[%s11 + $0x18] sm:$0xff]
    %v509 = vld [vmem:[%s11 + $0x20] sm:$0xff]
    %v510 = vld [vmem:[%s11 + $0x28] sm:$0xff]
    %v511 = vld [vmem:[%s11 + $0x30] sm:$0xff]
    %v512 = vld [vmem:[%s11 + $0x38] sm:$0xff]
    %514 = vset.pattern.permute.xlu0 0
    %515 = vperm.xlu0 %514, %v505
    %v516 = vpop.permute.xlu0 %515
    %519 = vset.pattern.permute.xlu0 0
    %520 = vperm.xlu0 %519, %v506
    %v521 = vpop.permute.xlu0 %520
    %524 = vset.pattern.permute.xlu0 0
    %525 = vperm.xlu0 %524, %v507
    %v526 = vpop.permute.xlu0 %525
    %529 = vset.pattern.permute.xlu0 0
    %530 = vperm.xlu0 %529, %v508
    %v531 = vpop.permute.xlu0 %530
    %534 = vset.pattern.permute.xlu0 0
    %535 = vperm.xlu0 %534, %v509
    %v536 = vpop.permute.xlu0 %535
    %539 = vset.pattern.permute.xlu0 0
    %540 = vperm.xlu0 %539, %v510
    %v541 = vpop.permute.xlu0 %540
    %544 = vset.pattern.permute.xlu0 0
    %545 = vperm.xlu0 %544, %v511
    %v546 = vpop.permute.xlu0 %545
    %549 = vset.pattern.permute.xlu0 0
    %550 = vperm.xlu0 %549, %v512
    %v551 = vpop.permute.xlu0 %550
    %v561 = vunpack.c.l.b16 %v495
    %v562 = vunpack.c.l.b16 %v496
    %v563 = vunpack.c.l.b16 %v497
    %v564 = vunpack.c.l.b16 %v498
    %v565 = vunpack.c.l.b16 %v499
    %v566 = vunpack.c.l.b16 %v500
    %v567 = vunpack.c.l.b16 %v501
    %v568 = vunpack.c.l.b16 %v502
    %v569 = vpack.c.b16 %v562, %v561
    %v570 = vpack.c.b16 %v564, %v563
    %v571 = vpack.c.b16 %v566, %v565
    %v572 = vpack.c.b16 %v568, %v567
    %v574 = vsel %vm341, %v569, 0
    %v577 = vsel %vm341, %v570, 0
    %v580 = vsel %vm341, %v571, 0
    %v583 = vsel %vm341, %v572, 0
    %585 = vmatprep.subr.bf16.mxu0 0
    %586 = vmatpush1.bf16.msra.mxu0 %v503
    %587 = vmatprep.subr.bf16.mxu0 0
    %588 = vmatpush1.bf16.msra.mxu0 %v504
    %589 = vmatprep.subr.bf16.mxu0 0
    %590 = vmatpush1.bf16.msra.mxu0 0
    %591 = vmatprep.subr.bf16.mxu0 0
    %592 = vmatpush1.bf16.msra.mxu0 0
    %593 = vmatprep.subr.bf16.mxu0 0
    %594 = vmatpush1.bf16.msra.mxu0 0
    %595 = vmatprep.subr.bf16.mxu0 0
    %596 = vmatpush1.bf16.msra.mxu0 0
    %597 = vmatprep.subr.bf16.mxu0 0
    %598 = vmatpush1.bf16.msra.mxu0 0
    %599 = vmatprep.subr.bf16.mxu0 0
    %600 = vmatpush1.bf16.msra.mxu0 0
    %601 = vmatprep.subr.bf16.mxu0 0
    %602 = vmatpush1.bf16.msra.mxu0 0
    %603 = vmatprep.subr.bf16.mxu0 0
    %604 = vmatpush1.bf16.msra.mxu0 0
    %605 = vmatprep.subr.bf16.mxu0 0
    %606 = vmatpush1.bf16.msra.mxu0 0
    %607 = vmatprep.subr.bf16.mxu0 0
    %608 = vmatpush1.bf16.msra.mxu0 0
    %609 = vmatprep.subr.bf16.mxu0 0
    %610 = vmatpush1.bf16.msra.mxu0 0
    %611 = vmatprep.subr.bf16.mxu0 0
    %612 = vmatpush1.bf16.msra.mxu0 0
    %613 = vmatprep.subr.bf16.mxu0 0
    %614 = vmatpush1.bf16.msra.mxu0 0
    %615 = vmatprep.subr.bf16.mxu0 0
    %616 = vmatpush1.bf16.msra.mxu0 0
    %617 = vmatprep.mubr.bf16.mxu0 0
    %618 = vmatmul.mubr.bf16.gmra.mrb[0].mxu0 %v574
    %v619 = vpop.f32.mrb[0].mxu0
    %v620 = vadd.f32 %v516, %v619
    %v621 = vpop.f32.mrb[0].mxu0
    %v622 = vpop.f32.mrb[0].mxu0
    %v623 = vadd.f32 %v521, %v622
    %v624 = vpop.f32.mrb[0].mxu0
    %625 = vmatprep.mubr.bf16.mxu0 0
    %626 = vmatmul.mubr.bf16.gmra.mrb[0].mxu0 %v577
    %v627 = vpop.f32.mrb[0].mxu0
    %v628 = vadd.f32 %v526, %v627
    %v629 = vpop.f32.mrb[0].mxu0
    %v630 = vpop.f32.mrb[0].mxu0
    %v631 = vadd.f32 %v531, %v630
    %v632 = vpop.f32.mrb[0].mxu0
    %633 = vmatprep.mubr.bf16.mxu0 0
    %634 = vmatmul.mubr.bf16.gmra.mrb[0].mxu0 %v580
    %v635 = vpop.f32.mrb[0].mxu0
    %v636 = vadd.f32 %v536, %v635
    %v637 = vpop.f32.mrb[0].mxu0
    %v638 = vpop.f32.mrb[0].mxu0
    %v639 = vadd.f32 %v541, %v638
    %v640 = vpop.f32.mrb[0].mxu0
    %641 = vmatprep.mubr.bf16.mxu0 0
    %642 = vmatmul.mubr.bf16.gmra.mrb[0].mxu0 %v583
    %v643 = vpop.f32.mrb[0].mxu0
    %v644 = vadd.f32 %v546, %v643
    %v645 = vpop.f32.mrb[0].mxu0
    %v646 = vpop.f32.mrb[0].mxu0
    %v647 = vadd.f32 %v551, %v646
    %v648 = vpop.f32.mrb[0].mxu0
    %649 = vdwg.mxu0
    %v650 = vmax.f32 %v620, 0.0
    %v651 = vmax.f32 %v623, 0.0
    %v652 = vmax.f32 %v628, 0.0
    %v653 = vmax.f32 %v631, 0.0
    %v654 = vmax.f32 %v636, 0.0
    %v655 = vmax.f32 %v639, 0.0
    %v656 = vmax.f32 %v644, 0.0
    %v657 = vmax.f32 %v647, 0.0
    %v658 = vld [vmem:[%s12] sm:$0xf]
    %v659 = vld [vmem:[%s12 + $0x4] sm:$0xf]
    %v660 = vpack.c.bf16 %v651, %v650
    %v661 = vpack.c.bf16 %v653, %v652
    %v662 = vpack.c.bf16 %v655, %v654
    %v663 = vpack.c.bf16 %v657, %v656
    %v664 = vld [vmem:[%s13] sm:$0xff]
    %v665 = vld [vmem:[%s13 + $0x8] sm:$0xff]
    %667 = vset.pattern.permute.xlu0 0
    %668 = vperm.xlu0 %667, %v664
    %v669 = vpop.permute.xlu0 %668
    %672 = vset.pattern.permute.xlu0 0
    %673 = vperm.xlu0 %672, %v665
    %v674 = vpop.permute.xlu0 %673
    %v678 = vunpack.c.l.b16 %v658
    %v679 = vunpack.c.l.b16 %v659
    %v680 = vpack.c.b16 %v679, %v678
    %v682 = vsel %vm260, %v680, 0
    %684 = vmatprep.subr.bf16.mxu0 0
    %685 = vmatpush1.bf16.msra.mxu0 %v660
    %686 = vmatprep.subr.bf16.mxu0 0
    %687 = vmatpush1.bf16.msra.mxu0 %v661
    %688 = vmatprep.subr.bf16.mxu0 0
    %689 = vmatpush1.bf16.msra.mxu0 %v662
    %690 = vmatprep.subr.bf16.mxu0 0
    %691 = vmatpush1.bf16.msra.mxu0 %v663
    %692 = vmatprep.subr.bf16.mxu0 0
    %693 = vmatpush1.bf16.msra.mxu0 0
    %694 = vmatprep.subr.bf16.mxu0 0
    %695 = vmatpush1.bf16.msra.mxu0 0
    %696 = vmatprep.subr.bf16.mxu0 0
    %697 = vmatpush1.bf16.msra.mxu0 0
    %698 = vmatprep.subr.bf16.mxu0 0
    %699 = vmatpush1.bf16.msra.mxu0 0
    %700 = vmatprep.subr.bf16.mxu0 0
    %701 = vmatpush1.bf16.msra.mxu0 0
    %702 = vmatprep.subr.bf16.mxu0 0
    %703 = vmatpush1.bf16.msra.mxu0 0
    %704 = vmatprep.subr.bf16.mxu0 0
    %705 = vmatpush1.bf16.msra.mxu0 0
    %706 = vmatprep.subr.bf16.mxu0 0
    %707 = vmatpush1.bf16.msra.mxu0 0
    %708 = vmatprep.subr.bf16.mxu0 0
    %709 = vmatpush1.bf16.msra.mxu0 0
    %710 = vmatprep.subr.bf16.mxu0 0
    %711 = vmatpush1.bf16.msra.mxu0 0
    %712 = vmatprep.subr.bf16.mxu0 0
    %713 = vmatpush1.bf16.msra.mxu0 0
    %714 = vmatprep.subr.bf16.mxu0 0
    %715 = vmatpush1.bf16.msra.mxu0 0
    %716 = vmatprep.mubr.bf16.mxu0 0
    %717 = vmatmul.mubr.bf16.gmra.mrb[0].mxu0 %v682
    %v718 = vpop.f32.mrb[0].mxu0
    %v719 = vadd.f32 %v669, %v718
    %v720 = vpop.f32.mrb[0].mxu0
    %v721 = vpop.f32.mrb[0].mxu0
    %v722 = vadd.f32 %v674, %v721
    %v723 = vpop.f32.mrb[0].mxu0
    %724 = vdwg.mxu0
    %v725 = vxor.u32 %v719, 2147483648
    %v726 = vxor.u32 %v722, 2147483648
    %v727 = vmul.f32 %v725, 1.442695
    %v728 = vpow.pop %v727
    %v729 = vmul.f32 %v726, 1.442695
    %v730 = vpow.pop %v729
    %v731 = vadd.f32 %v728, 1.0
    %v732 = vadd.f32 %v730, 1.0
    %v733 = vrcp.pop %v731
    %v734 = vmul.f32 1.0, %v733
    %v735 = vrcp.pop %v732
    %v736 = vmul.f32 1.0, %v735
    %737 = vst [vmem:[#allocation2] sm:$0xff] %v734
    %738 = vst [vmem:[#allocation2 + $0x8] sm:$0xff] %v736
    %739 = vst [vmem:[#allocation4] sm:$0xff] %v380
    %740 = vst [vmem:[#allocation6] sm:$0xff] %v383
    // Predicated region
    $region58: #{tpu_custom_call.1} parent=1 // pred_check
      _
    $region59: #{tpu_custom_call.1} parent=1 // pred_check_branch
      %742 = sbr.rel (0) target = $region61
    $region60: #{tpu_custom_call.1} parent=1 // pred_region
      %s744 = ssub.s32 256, 256
      %745 = vsyncadd [#allocation3], %s744
      %s746 = sshll.u32 [#allocation2], 4
      %s747 = int_to_ptr.vmem [resolvable:$true] %s746
      %752 = dma.vmem_to_hbm [thread:$0]  %s747, 256, %s14, [#allocation3], 128, 128, 8
    $region61: #{tpu_custom_call.1} parent=1 // pred_fallthru
      _
    // Predicated region
    $region62: #{tpu_custom_call.1} parent=1 // pred_check
      _
    $region63: #{tpu_custom_call.1} parent=1 // pred_check_branch
      %754 = sbr.rel (0) target = $region65
    $region64: #{tpu_custom_call.1} parent=1 // pred_region
      %s756 = ssub.s32 128, 128
      %757 = vsyncadd [#allocation5], %s756
      %s759 = sshll.u32 [#allocation4], 4
      %s760 = int_to_ptr.vmem [resolvable:$true] %s759
      %762 = dma.vmem_to_hbm [thread:$0]  %s760, 128, %s15, [#allocation5]
    $region65: #{tpu_custom_call.1} parent=1 // pred_fallthru
      _
    // Predicated region
    $region66: #{tpu_custom_call.1} parent=1 // pred_check
      _
    $region67: #{tpu_custom_call.1} parent=1 // pred_check_branch
      %764 = sbr.rel (0) target = $region69
    $region68: #{tpu_custom_call.1} parent=1 // pred_region
      %s766 = ssub.s32 128, 128
      %767 = vsyncadd [#allocation5], %s766
      %s769 = sshll.u32 [#allocation6], 4
      %s770 = int_to_ptr.vmem [resolvable:$true] %s769
      %772 = dma.vmem_to_hbm [thread:$0]  %s770, 128, %s16, [#allocation5]
    $region69: #{tpu_custom_call.1} parent=1 // pred_fallthru
      _
    // Predicated region
    $region70: #{tpu_custom_call.1} parent=1 // pred_check
      _
    $region71: #{tpu_custom_call.1} parent=1 // pred_check_branch
      %774 = sbr.rel (0) target = $region73
    $region72: #{tpu_custom_call.1} parent=1 // pred_region
      %775 = dma.done [#allocation3], 256
    $region73: #{tpu_custom_call.1} parent=1 // pred_fallthru
      _
    // Predicated region
    $region74: #{tpu_custom_call.1} parent=1 // pred_check
      _
    $region75: #{tpu_custom_call.1} parent=1 // pred_check_branch
      %777 = sbr.rel (0) target = $region77
    $region76: #{tpu_custom_call.1} parent=1 // pred_region
      %778 = dma.done [#allocation5], 128
    $region77: #{tpu_custom_call.1} parent=1 // pred_fallthru
      _
    // Predicated region
    $region78: #{tpu_custom_call.1} parent=1 // pred_check
      _
    $region79: #{tpu_custom_call.1} parent=1 // pred_check_branch
      %780 = sbr.rel (0) target = $region81
    $region80: #{tpu_custom_call.1} parent=1 // pred_region
      %781 = dma.done [#allocation5], 128
    $region81: #{tpu_custom_call.1} parent=1 // pred_fallthru
      _
    %782 = vsyncpa [#allocation3], 1
    %783 = vsyncpa [#allocation5], 1

</llo_original>
